<compile_context>
chip_gen: v7x
topology: tpu7x:2x2x1
jax: 0.10.0
libtpu: 0.0.40
codegen_flags: <defaults>
</compile_context>

<pallas_src>
import jax
import jax.numpy as jnp
from jax import lax
from jax.experimental import pallas as pl
from jax.experimental.pallas import tpu as pltpu


# ----------------------------------------------------------------------------
# Single-graph kernel (exact module forward; whole problem fits in VMEM).
# ----------------------------------------------------------------------------
def sga_kernel(xs_ref, xd_ref, wq_ref, bq_ref, wkv_ref, bkv_ref, out_ref):
    xs = xs_ref[...]                      # [N_src, Cin]
    xd = xd_ref[...]                      # [N_dst, Cin]

    c_out = out_ref.shape[-1]
    n_dst = xd.shape[0]                   # static == x_dst.size(0)

    # Q projection (MXU) + bias.
    q = jnp.dot(xs, wq_ref[...], preferred_element_type=jnp.float32) + bq_ref[...]

    # Fused K/V projection: one MXU matmul, slice k / v out of the result.
    kv_proj = (jnp.dot(xd, wkv_ref[...], preferred_element_type=jnp.float32)
               + bkv_ref[...])            # [N_dst, 2*Cout]
    k = kv_proj[:, :c_out]
    v = kv_proj[:, c_out:]

    # torch.norm(t, p=2) with no dim == Frobenius norm of the whole tensor.
    # Both norms only enter as the factor 1/(|q||k|); fold that scalar into q
    # (the smallest tensor it touches on this path).  Keep two rsqrts instead
    # of rsqrt(sum_q2 * sum_k2) to avoid overflow/underflow of the product.
    s = lax.rsqrt(jnp.sum(q * q)) * lax.rsqrt(jnp.sum(k * k))
    q_s = q * s                           # [N_src, Cout]

    # kv = k^T @ v without materializing k.T (contract axis 0 of both).
    kv = lax.dot_general(k, v, dimension_numbers=(((0,), (0,)), ((), ())),
                         preferred_element_type=jnp.float32)   # [Cout, Cout]

    # up = q_n @ (k_n^T v) + N * v
    up = jnp.dot(q_s, kv, preferred_element_type=jnp.float32)
    up = up + jnp.float32(n_dst) * v      # requires N_src == N_dst (as in torch)

    # down_i = q_n_i . sum_j k_n_j + N  — broadcast-multiply + lane reduce.
    k_sum = jnp.sum(k, axis=0, keepdims=True)                  # [1, Cout]
    down = jnp.sum(q_s * k_sum, axis=-1, keepdims=True) + jnp.float32(n_dst)

    # One exact reciprocal per row, then multiply.
    out_ref[...] = (up * pl.reciprocal(down)).astype(out_ref.dtype)


# ----------------------------------------------------------------------------
# Lane-packed kernel: G graphs packed along the 128-lane axis per grid step.
# ----------------------------------------------------------------------------
def sga_packed_kernel(xs_ref, xd_ref, wq_ref, bq_ref, wkv_ref, bkv_ref,
                      blk_ref, out_ref):
    gcout = out_ref.shape[-1]             # G * Cout (128 for G=4, Cout=32)
    n_dst = xd_ref.shape[0]

    xs = xs_ref[...]                      # [N, G*Cin]
    xd = xd_ref[...]                      # [N, G*Cin]
    blk = blk_ref[...]                    # [G*Cout, G*Cout] block-diag ones

    # Block-diagonal projections: one MXU pass projects all G graphs.
    q = jnp.dot(xs, wq_ref[...], preferred_element_type=jnp.float32) + bq_ref[...]
    kv_proj = (jnp.dot(xd, wkv_ref[...], preferred_element_type=jnp.float32)
               + bkv_ref[...])            # [N, 2*G*Cout]
    k = kv_proj[:, :gcout]                # [N, G*Cout]
    v = kv_proj[:, gcout:]                # [N, G*Cout]

    # Per-graph Frobenius-norm sums, broadcast back to every lane of the
    # graph's 32-lane block via the block-diagonal ones matrix (MXU).
    q_ss = jnp.dot(jnp.sum(q * q, axis=0, keepdims=True), blk,
                   preferred_element_type=jnp.float32)          # [1, G*Cout]
    k_ss = jnp.dot(jnp.sum(k * k, axis=0, keepdims=True), blk,
                   preferred_element_type=jnp.float32)          # [1, G*Cout]
    s = lax.rsqrt(q_ss) * lax.rsqrt(k_ss)                       # [1, G*Cout]
    q_s = q * s                                                  # fold scale into q

    # kv = k^T v; cross-graph blocks are zeroed by the block-diagonal mask,
    # so the packed q_s @ kv matmul stays per-graph exact.
    kv = lax.dot_general(k, v, dimension_numbers=(((0,), (0,)), ((), ())),
                         preferred_element_type=jnp.float32) * blk   # [GC, GC]
    up = (jnp.dot(q_s, kv, preferred_element_type=jnp.float32)
          + jnp.float32(n_dst) * v)                              # [N, G*Cout]

    # down: per-row per-graph dot with the column-sum of k, block-summed and
    # broadcast back across the graph's lane block in one matmul.
    k_sum = jnp.sum(k, axis=0, keepdims=True)                    # [1, G*Cout]
    down = (jnp.dot(q_s * k_sum, blk, preferred_element_type=jnp.float32)
            + jnp.float32(n_dst))                                # [N, G*Cout]

    # Full-width (128-lane) unmasked store.
    out_ref[...] = (up * pl.reciprocal(down)).astype(out_ref.dtype)


# ----------------------------------------------------------------------------
# Parameter / layout helpers (wrapper-side layout plumbing only).
# ----------------------------------------------------------------------------
def _fuse_params(params):
    wq, bq, wk, bk, wv, bv = params
    wkv = jnp.concatenate([wk, wv], axis=1)      # [Cin, 2*Cout]
    bkv = jnp.concatenate([bk, bv], axis=1)      # [1, 2*Cout]
    return wq, bq, wkv, bkv


def _block_diag(w, g):
    """[Cin, Cout] -> [g*Cin, g*Cout] block-diagonal replication."""
    cin, cout = w.shape
    eye = jnp.eye(g, dtype=w.dtype)
    return (eye[:, None, :, None] * w[None, :, None, :]).reshape(g * cin, g * cout)


def _pack_params(params, g):
    wq, bq, wk, bk, wv, bv = params
    wq_bd = _block_diag(wq, g)                                        # [G*Cin, G*Cout]
    wkv_bd = jnp.concatenate([_block_diag(wk, g), _block_diag(wv, g)], axis=1)
    bq_t = jnp.tile(bq, (1, g))                                       # [1, G*Cout]
    bkv_t = jnp.concatenate([jnp.tile(bk, (1, g)), jnp.tile(bv, (1, g))], axis=1)
    c_out = wq.shape[1]
    blk = _block_diag(jnp.ones((c_out, c_out), jnp.float32), g)       # [G*Cout, G*Cout]
    return wq_bd, bq_t, wkv_bd, bkv_t, blk


def _pack_groups(x, g):
    """[B, N, C] -> [B//g, N, g*C]: pack g graphs along the lane axis."""
    b, n, c = x.shape
    return x.reshape(b // g, g, n, c).transpose(0, 2, 1, 3).reshape(b // g, n, g * c)


def _unpack_groups(y, g):
    """[B//g, N, g*C] -> [B, N, C]."""
    ng, n, gc = y.shape
    c = gc // g
    return y.reshape(ng, n, g, c).transpose(0, 2, 1, 3).reshape(ng * g, n, c)


# ----------------------------------------------------------------------------
# Entry points.
# ----------------------------------------------------------------------------
def sga_forward(x_src, x_dst, params):
    """Single-graph forward: exactly the PyTorch module's forward."""
    assert x_src.shape[0] == x_dst.shape[0], "`up += N*v` requires N_src == N_dst"
    wq, bq, wkv, bkv = _fuse_params(params)
    n_src = x_src.shape[0]
    c_out = wq.shape[1]
    vmem = pl.BlockSpec(memory_space=pltpu.MemorySpace.VMEM)
    return pl.pallas_call(
        sga_kernel,
        out_shape=jax.ShapeDtypeStruct((n_src, c_out), jnp.float32),
        in_specs=[vmem] * 6,
        out_specs=vmem,
    )(x_src, x_dst, wq, bq, wkv, bkv)


def sga_forward_batched(x_src, x_dst, params, group=4):
    """Batch of independent graphs: x_src / x_dst are [B, N, Cin].

    G graphs are lane-packed per grid step (Cout * G = 128 lanes for the
    default sizes), so the whole batch runs in B/G grid steps with stacked
    block-diagonal projections and full-width stores.  The group axis is
    "parallel" so both v7x TensorCores are used.
    """
    assert x_src.shape[1] == x_dst.shape[1], "`up += N*v` requires N_src == N_dst"
    b, n_src, c_in = x_src.shape
    _, n_dst, _ = x_dst.shape
    g = group
    assert b % g == 0, "batch must be a multiple of the lane-packing group"
    c_out = params[0].shape[1]
    gcin, gcout = g * c_in, g * c_out

    wq_bd, bq_t, wkv_bd, bkv_t, blk = _pack_params(params, g)
    xs_p = _pack_groups(x_src, g)                 # [B/G, N, G*Cin]
    xd_p = _pack_groups(x_dst, g)
    ngroups = b // g

    out_p = pl.pallas_call(
        sga_packed_kernel,
        out_shape=jax.ShapeDtypeStruct((ngroups, n_src, gcout), jnp.float32),
        grid=(ngroups,),
        in_specs=[
            pl.BlockSpec((None, n_src, gcin), lambda i: (i, 0, 0)),   # x_src group
            pl.BlockSpec((None, n_dst, gcin), lambda i: (i, 0, 0)),   # x_dst group
            pl.BlockSpec((gcin, gcout), lambda i: (0, 0)),            # wq  (block-diag)
            pl.BlockSpec((1, gcout), lambda i: (0, 0)),               # bq  (tiled)
            pl.BlockSpec((gcin, 2 * gcout), lambda i: (0, 0)),        # wkv (block-diag)
            pl.BlockSpec((1, 2 * gcout), lambda i: (0, 0)),           # bkv (tiled)
            pl.BlockSpec((gcout, gcout), lambda i: (0, 0)),           # block-diag ones
        ],
        out_specs=pl.BlockSpec((None, n_src, gcout), lambda i: (i, 0, 0)),
        compiler_params=pltpu.CompilerParams(
            dimension_semantics=("parallel",)),
    )(xs_p, xd_p, wq_bd, bq_t, wkv_bd, bkv_t, blk)

    return _unpack_groups(out_p, g)               # [B, N, Cout]


# ----------------------------------------------------------------------------
# Pure-JAX reference + synthetic init.
# ----------------------------------------------------------------------------
def sga_reference(x_src, x_dst, params):
    """Pure-JAX mirror of the PyTorch forward, for verification."""
    wq, bq, wk, bk, wv, bv = params
    q = x_src @ wq + bq
    k = x_dst @ wk + bk
    v = x_dst @ wv + bv
    q = q / jnp.linalg.norm(q)
    k = k / jnp.linalg.norm(k)
    n = x_dst.shape[0]
    up = jnp.einsum('ij,ik->jk', k, v)
    up = jnp.einsum('ij,jk->ik', q, up)
    up = up + n * v
    down = k.sum(axis=0)
    down = jnp.einsum('ij,j->i', q, down)
    down = down + n
    return up / down[:, None]


def init_params(key, in_channels, out_channels):
    # Deterministic synthetic init (PyTorch nn.Linear shapes: weight [out,in],
    # bias [out]); weights are stored already transposed to [in, out].
    ks = jax.random.split(key, 6)
    scale = 1.0 / jnp.sqrt(jnp.float32(in_channels))
    def w(k):
        return jax.random.uniform(k, (in_channels, out_channels), jnp.float32,
                                  -scale, scale)
    def b(k):
        return jax.random.uniform(k, (1, out_channels), jnp.float32, -scale, scale)
    return (w(ks[0]), b(ks[1]), w(ks[2]), b(ks[3]), w(ks[4]), b(ks[5]))


if __name__ == "__main__":
    in_channels, out_channels = 16, 32
    n = 8          # N_src == N_dst (required by `up += N * v` in the forward)
    batch = 8      # independent graphs for the lane-packed batched path
    group = 4      # graphs per grid step -> 4 * 32 = 128-lane-dense tiles

    key = jax.random.PRNGKey(0)
    k_src, k_dst, k_par = jax.random.split(key, 3)
    params = init_params(k_par, in_channels, out_channels)

    # --- single-graph forward (matches the module exactly) ---
    x_src = jax.random.normal(k_src, (n, in_channels), jnp.float32)
    x_dst = jax.random.normal(k_dst, (n, in_channels), jnp.float32)
    out = jax.block_until_ready(sga_forward(x_src, x_dst, params))
    ref = sga_reference(x_src, x_dst, params)
    assert out.shape == (n, out_channels)
    assert jnp.allclose(out, ref, atol=1e-4, rtol=1e-4), "single-graph mismatch"

    # --- batched, lane-packed forward over independent graphs ---
    xs_b = jax.random.normal(k_src, (batch, n, in_channels), jnp.float32)
    xd_b = jax.random.normal(k_dst, (batch, n, in_channels), jnp.float32)
    out_b = jax.block_until_ready(sga_forward_batched(xs_b, xd_b, params, group=group))
    ref_b = jax.vmap(lambda a, b: sga_reference(a, b, params))(xs_b, xd_b)
    assert out_b.shape == (batch, n, out_channels)
    assert jnp.allclose(out_b, ref_b, atol=1e-4, rtol=1e-4), "batched mismatch"

    print("KERNEL_OK")
</pallas_src>

<mosaic_0001>
module attributes {stable_mosaic.version = 11 : i64} {
  func.func @sga_kernel(%arg0: memref<8x16xf32, #tpu.memory_space<vmem>>, %arg1: memref<8x16xf32, #tpu.memory_space<vmem>>, %arg2: memref<16x32xf32, #tpu.memory_space<vmem>>, %arg3: memref<1x32xf32, #tpu.memory_space<vmem>>, %arg4: memref<16x64xf32, #tpu.memory_space<vmem>>, %arg5: memref<1x64xf32, #tpu.memory_space<vmem>>, %arg6: memref<8x32xf32, #tpu.memory_space<vmem>>) attributes {dimension_semantics = [], scalar_prefetch = 0 : i64, scratch_operands = 0 : i64, tpu.core_type = #tpu.core_type<tc>} {
    %c0 = arith.constant 0 : index
    %c0_0 = arith.constant 0 : index
    %0 = vector.load %arg0[%c0, %c0_0] : memref<8x16xf32, #tpu.memory_space<vmem>>, vector<8x16xf32>
    %c0_1 = arith.constant 0 : index
    %c0_2 = arith.constant 0 : index
    %1 = vector.load %arg1[%c0_1, %c0_2] : memref<8x16xf32, #tpu.memory_space<vmem>>, vector<8x16xf32>
    %c0_3 = arith.constant 0 : index
    %c0_4 = arith.constant 0 : index
    %2 = vector.load %arg2[%c0_3, %c0_4] : memref<16x32xf32, #tpu.memory_space<vmem>>, vector<16x32xf32>
    %cst = arith.constant dense<0.000000e+00> : vector<8x32xf32>
    %3 = tpu.matmul %0, %2, %cst {dimension_numbers = #tpu.dot_dimension_numbers<[1], [0], [0], [1], [0, 0, 1, 1], [], []>} : vector<8x16xf32>, vector<16x32xf32>, vector<8x32xf32> -> vector<8x32xf32>
    %c0_5 = arith.constant 0 : index
    %c0_6 = arith.constant 0 : index
    %4 = vector.load %arg3[%c0_5, %c0_6] : memref<1x32xf32, #tpu.memory_space<vmem>>, vector<1x32xf32>
    %5 = vector.broadcast %4 : vector<1x32xf32> to vector<8x32xf32>
    %6 = arith.addf %3, %5 : vector<8x32xf32>
    %c0_7 = arith.constant 0 : index
    %c0_8 = arith.constant 0 : index
    %7 = vector.load %arg4[%c0_7, %c0_8] : memref<16x64xf32, #tpu.memory_space<vmem>>, vector<16x64xf32>
    %cst_9 = arith.constant dense<0.000000e+00> : vector<8x64xf32>
    %8 = tpu.matmul %1, %7, %cst_9 {dimension_numbers = #tpu.dot_dimension_numbers<[1], [0], [0], [1], [0, 0, 1, 1], [], []>} : vector<8x16xf32>, vector<16x64xf32>, vector<8x64xf32> -> vector<8x64xf32>
    %c0_10 = arith.constant 0 : index
    %c0_11 = arith.constant 0 : index
    %9 = vector.load %arg5[%c0_10, %c0_11] : memref<1x64xf32, #tpu.memory_space<vmem>>, vector<1x64xf32>
    %10 = vector.broadcast %9 : vector<1x64xf32> to vector<8x64xf32>
    %11 = arith.addf %8, %10 : vector<8x64xf32>
    %12 = vector.extract_strided_slice %11 {offsets = [0, 0], sizes = [8, 32], strides = [1, 1]} : vector<8x64xf32> to vector<8x32xf32>
    %13 = vector.extract_strided_slice %11 {offsets = [0, 32], sizes = [8, 32], strides = [1, 1]} : vector<8x64xf32> to vector<8x32xf32>
    %14 = arith.mulf %6, %6 : vector<8x32xf32>
    %15 = vector.shape_cast %14 : vector<8x32xf32> to vector<1x8x32xf32>
    %cst_12 = arith.constant dense<0.000000e+00> : vector<1xf32>
    %16 = vector.multi_reduction <add>, %15, %cst_12 [1, 2] : vector<1x8x32xf32> to vector<1xf32>
    %17 = vector.shape_cast %16 : vector<1xf32> to vector<1x1x1xf32>
    %18 = vector.extract %17[0, 0, 0] : f32 from vector<1x1x1xf32>
    %19 = math.rsqrt %18 : f32
    %20 = arith.mulf %12, %12 : vector<8x32xf32>
    %21 = vector.shape_cast %20 : vector<8x32xf32> to vector<1x8x32xf32>
    %cst_13 = arith.constant dense<0.000000e+00> : vector<1xf32>
    %22 = vector.multi_reduction <add>, %21, %cst_13 [1, 2] : vector<1x8x32xf32> to vector<1xf32>
    %23 = vector.shape_cast %22 : vector<1xf32> to vector<1x1x1xf32>
    %24 = vector.extract %23[0, 0, 0] : f32 from vector<1x1x1xf32>
    %25 = math.rsqrt %24 : f32
    %26 = arith.mulf %19, %25 : f32
    %27 = vector.broadcast %26 : f32 to vector<8x32xf32>
    %28 = arith.mulf %6, %27 : vector<8x32xf32>
    %cst_14 = arith.constant dense<0.000000e+00> : vector<32x32xf32>
    %29 = tpu.matmul %12, %13, %cst_14 {dimension_numbers = #tpu.dot_dimension_numbers<[0], [0], [1], [1], [0, 1, 1, 1], [], []>} : vector<8x32xf32>, vector<8x32xf32>, vector<32x32xf32> -> vector<32x32xf32>
    %cst_15 = arith.constant dense<0.000000e+00> : vector<8x32xf32>
    %30 = tpu.matmul %28, %29, %cst_15 {dimension_numbers = #tpu.dot_dimension_numbers<[1], [0], [0], [1], [0, 0, 1, 1], [], []>} : vector<8x32xf32>, vector<32x32xf32>, vector<8x32xf32> -> vector<8x32xf32>
    %cst_16 = arith.constant 8.000000e+00 : f32
    %31 = vector.broadcast %cst_16 : f32 to vector<8x32xf32>
    %32 = arith.mulf %31, %13 : vector<8x32xf32>
    %33 = arith.addf %30, %32 : vector<8x32xf32>
    %cst_17 = arith.constant dense<0.000000e+00> : vector<32xf32>
    %34 = vector.multi_reduction <add>, %12, %cst_17 [0] : vector<8x32xf32> to vector<32xf32>
    %35 = vector.shape_cast %34 : vector<32xf32> to vector<1x32xf32>
    %36 = vector.broadcast %35 : vector<1x32xf32> to vector<8x32xf32>
    %37 = arith.mulf %28, %36 : vector<8x32xf32>
    %cst_18 = arith.constant dense<0.000000e+00> : vector<8xf32>
    %38 = vector.multi_reduction <add>, %37, %cst_18 [1] : vector<8x32xf32> to vector<8xf32>
    %39 = vector.shape_cast %38 : vector<8xf32> to vector<8x1xf32>
    %cst_19 = arith.constant 8.000000e+00 : f32
    %40 = vector.broadcast %cst_19 : f32 to vector<8x1xf32>
    %41 = arith.addf %39, %40 : vector<8x1xf32>
    %42 = tpu.reciprocal %41 : vector<8x1xf32> -> vector<8x1xf32>
    %43 = vector.broadcast %42 : vector<8x1xf32> to vector<8x32xf32>
    %44 = arith.mulf %33, %43 : vector<8x32xf32>
    %c0_20 = arith.constant 0 : index
    %c0_21 = arith.constant 0 : index
    %45 = vector.load %arg6[%c0_20, %c0_21] : memref<8x32xf32, #tpu.memory_space<vmem>>, vector<8x32xf32>
    tpu.vector_store %arg6[%c0_20, %c0_21], %44 {strides = array<i32>} : memref<8x32xf32, #tpu.memory_space<vmem>>, vector<8x32xf32>,
    return
  }
}

</mosaic_0001>

<llo_original>
// kernel: tpu_custom_call.1
$region0: #{tpu_custom_call.1}
  #allocation0 [shape = 'u32[]', space=smem, size = 0x4, offset = 0x4, fixed_abs, tag = 'smem constant byte address 0x4 - core index']
  #allocation1 [shape = 'u32[144,128]{1,0:T(1,128)}', space=vmem, size = 0x12000, scoped, tag = 'internal scratch']
  %s0 = inlined_call_operand.hbm [shape: f32[8,16], index: 0, kind: input, shape index: {}]
  %s1 = inlined_call_operand.hbm [shape: f32[8,16], index: 1, kind: input, shape index: {}]
  %s2 = inlined_call_operand.hbm [shape: f32[16,32], index: 2, kind: input, shape index: {}]
  %s3 = inlined_call_operand.vmem [shape: f32[1,32], index: 3, kind: input, shape index: {}]
  %s4 = inlined_call_operand.hbm [shape: f32[16,64], index: 4, kind: input, shape index: {}]
  %s5 = inlined_call_operand.vmem [shape: f32[1,64], index: 5, kind: input, shape index: {}]
  %s6 = inlined_call_operand.hbm [shape: f32[8,32], index: 6, kind: output, shape index: {}]
  %s7 = sld [smem:[#allocation0]]
  $region50: #{tpu_custom_call.1} parent=0
    _
  %s9 = ssub.s32 1, %s7
  %s10 = scalar_select 0, %s9, %s7
  $region1: #{tpu_custom_call.1} parent=0
    #allocation2 [shape = 'u8[4096]{0}', space=vmem, size = 0x1000, scoped, tag = 'input window, operand 0, single buffered']
    #allocation3 [shape = 's32[1]{0}', space=sflag, size = 0x4, scoped, tag = 'scoped memory for tpu_custom_call.1']
    #allocation4 [shape = 's32[1]{0}', space=sflag, size = 0x4, scoped, tag = 'scoped memory for tpu_custom_call.1']
    #allocation5 [shape = 'u8[4096]{0}', space=vmem, size = 0x1000, scoped, tag = 'input window, operand 1, single buffered']
    #allocation6 [shape = 's32[1]{0}', space=sflag, size = 0x4, scoped, tag = 'scoped memory for tpu_custom_call.1']
    #allocation7 [shape = 'u8[8192]{0}', space=vmem, size = 0x2000, scoped, tag = 'input window, operand 2, single buffered']
    #allocation8 [shape = 'u8[8192]{0}', space=vmem, size = 0x2000, scoped, tag = 'input window, operand 4, single buffered']
    #allocation9 [shape = 's32[1]{0}', space=sflag, size = 0x4, scoped, tag = 'scoped memory for tpu_custom_call.1']
    #allocation10 [shape = 'u8[4096]{0}', space=vmem, size = 0x1000, scoped, tag = 'output window, operand 0, single buffered']
    %11 = vsyncpa [#allocation3], 0
    %12 = vsyncpa [#allocation6], 0
    %13 = vsyncpa [#allocation9], 0
    %14 = vsyncpa [#allocation4], 0
    // Predicated region
    $region2: #{tpu_custom_call.1} parent=1 // pred_check
      _
    $region3: #{tpu_custom_call.1} parent=1 // pred_check_branch
      %16 = sbr.rel (0) target = $region5
    $region4: #{tpu_custom_call.1} parent=1 // pred_region
      %s18 = ssub.s32 128, 128
      %19 = vsyncadd [#allocation3], %s18
      %s21 = sshll.u32 [#allocation2], 4
      %s22 = int_to_ptr.vmem [resolvable:$true] %s21
      %24 = dma.hbm_to_vmem [thread:$0]  %s0, 128, %s22, [#allocation3]
    $region5: #{tpu_custom_call.1} parent=1 // pred_fallthru
      _
    // Predicated region
    $region6: #{tpu_custom_call.1} parent=1 // pred_check
      _
    $region7: #{tpu_custom_call.1} parent=1 // pred_check_branch
      %26 = sbr.rel (0) target = $region9
    $region8: #{tpu_custom_call.1} parent=1 // pred_region
      %s28 = ssub.s32 128, 128
      %29 = vsyncadd [#allocation6], %s28
      %s31 = sshll.u32 [#allocation5], 4
      %s32 = int_to_ptr.vmem [resolvable:$true] %s31
      %34 = dma.hbm_to_vmem [thread:$0]  %s1, 128, %s32, [#allocation6]
    $region9: #{tpu_custom_call.1} parent=1 // pred_fallthru
      _
    // Predicated region
    $region10: #{tpu_custom_call.1} parent=1 // pred_check
      _
    $region11: #{tpu_custom_call.1} parent=1 // pred_check_branch
      %36 = sbr.rel (0) target = $region13
    $region12: #{tpu_custom_call.1} parent=1 // pred_region
      %s38 = ssub.s32 256, 256
      %39 = vsyncadd [#allocation6], %s38
      %s40 = sshll.u32 [#allocation7], 4
      %s41 = int_to_ptr.vmem [resolvable:$true] %s40
      %46 = dma.hbm_to_vmem [thread:$0]  %s2, 256, %s41, [#allocation6], 128, 128, 8
    $region13: #{tpu_custom_call.1} parent=1 // pred_fallthru
      _
    // Predicated region
    $region14: #{tpu_custom_call.1} parent=1 // pred_check
      _
    $region15: #{tpu_custom_call.1} parent=1 // pred_check_branch
      %48 = sbr.rel (0) target = $region17
    $region16: #{tpu_custom_call.1} parent=1 // pred_region
      _
    $region17: #{tpu_custom_call.1} parent=1 // pred_fallthru
      _
    // Predicated region
    $region18: #{tpu_custom_call.1} parent=1 // pred_check
      _
    $region19: #{tpu_custom_call.1} parent=1 // pred_check_branch
      %50 = sbr.rel (0) target = $region21
    $region20: #{tpu_custom_call.1} parent=1 // pred_region
      %s52 = ssub.s32 256, 256
      %53 = vsyncadd [#allocation9], %s52
      %s54 = sshll.u32 [#allocation8], 4
      %s55 = int_to_ptr.vmem [resolvable:$true] %s54
      %60 = dma.hbm_to_vmem [thread:$0]  %s4, 256, %s55, [#allocation9], 128, 128, 8
    $region21: #{tpu_custom_call.1} parent=1 // pred_fallthru
      _
    // Predicated region
    $region22: #{tpu_custom_call.1} parent=1 // pred_check
      _
    $region23: #{tpu_custom_call.1} parent=1 // pred_check_branch
      %62 = sbr.rel (0) target = $region25
    $region24: #{tpu_custom_call.1} parent=1 // pred_region
      _
    $region25: #{tpu_custom_call.1} parent=1 // pred_fallthru
      _
    // Predicated region
    $region26: #{tpu_custom_call.1} parent=1 // pred_check
      _
    $region27: #{tpu_custom_call.1} parent=1 // pred_check_branch
      %64 = sbr.rel (0) target = $region29
    $region28: #{tpu_custom_call.1} parent=1 // pred_region
      %65 = dma.done [#allocation3], 128
    $region29: #{tpu_custom_call.1} parent=1 // pred_fallthru
      _
    // Predicated region
    $region30: #{tpu_custom_call.1} parent=1 // pred_check
      _
    $region31: #{tpu_custom_call.1} parent=1 // pred_check_branch
      %67 = sbr.rel (0) target = $region33
    $region32: #{tpu_custom_call.1} parent=1 // pred_region
      %68 = dma.done [#allocation6], 128
    $region33: #{tpu_custom_call.1} parent=1 // pred_fallthru
      _
    // Predicated region
    $region34: #{tpu_custom_call.1} parent=1 // pred_check
      _
    $region35: #{tpu_custom_call.1} parent=1 // pred_check_branch
      %70 = sbr.rel (0) target = $region37
    $region36: #{tpu_custom_call.1} parent=1 // pred_region
      %71 = dma.done [#allocation6], 256
    $region37: #{tpu_custom_call.1} parent=1 // pred_fallthru
      _
    // Predicated region
    $region38: #{tpu_custom_call.1} parent=1 // pred_check
      _
    $region39: #{tpu_custom_call.1} parent=1 // pred_check_branch
      %73 = sbr.rel (0) target = $region41
    $region40: #{tpu_custom_call.1} parent=1 // pred_region
      %74 = dma.done [#allocation9], 256
    $region41: #{tpu_custom_call.1} parent=1 // pred_fallthru
      _
    %v75 = vld [vmem:[#allocation2] sm:$0xff]
    %v76 = vld [vmem:[#allocation5] sm:$0xff]
    %v77 = vld [vmem:[#allocation7] sm:$0xff]
    %v78 = vld [vmem:[#allocation7 + $0x8] sm:$0xff]
    %v79 = vld [vmem:[%s3] sm:$0x1]
    %v81 = vlaneseq
    %v82 = vshrl.u32 %v81, 7
    %v83 = vsub.s32 0, %v82
    %v84 = vrot.slane %v79, %v83
    %vm86 = vcmask 130048
    %v88 = vsel %vm86, %v75, 0
    %90 = vmatprep.subr.mxu0 0.0
    %91 = vmatpush1.msra.mxu0 %v77
    %92 = vmatprep.subr.mxu0 0.0
    %93 = vmatpush1.msra.mxu0 %v78
    %94 = vmatprep.subr.mxu0 0.0
    %95 = vmatpush1.msra.mxu0 0.0
    %96 = vmatprep.subr.mxu0 0.0
    %97 = vmatpush1.msra.mxu0 0.0
    %98 = vmatprep.subr.mxu0 0.0
    %99 = vmatpush1.msra.mxu0 0.0
    %100 = vmatprep.subr.mxu0 0.0
    %101 = vmatpush1.msra.mxu0 0.0
    %102 = vmatprep.subr.mxu0 0.0
    %103 = vmatpush1.msra.mxu0 0.0
    %104 = vmatprep.subr.mxu0 0.0
    %105 = vmatpush1.msra.mxu0 0.0
    %106 = vmatprep.subr.mxu0 0.0
    %107 = vmatpush1.msra.mxu0 0.0
    %108 = vmatprep.subr.mxu0 0.0
    %109 = vmatpush1.msra.mxu0 0.0
    %110 = vmatprep.subr.mxu0 0.0
    %111 = vmatpush1.msra.mxu0 0.0
    %112 = vmatprep.subr.mxu0 0.0
    %113 = vmatpush1.msra.mxu0 0.0
    %114 = vmatprep.subr.mxu0 0.0
    %115 = vmatpush1.msra.mxu0 0.0
    %116 = vmatprep.subr.mxu0 0.0
    %117 = vmatpush1.msra.mxu0 0.0
    %118 = vmatprep.subr.mxu0 0.0
    %119 = vmatpush1.msra.mxu0 0.0
    %120 = vmatprep.subr.mxu0 0.0
    %121 = vmatpush1.msra.mxu0 0.0
    %122 = vmatprep.subr.mxu0 0.0
    %123 = vmatpush1.msra.mxu0 0.0
    %124 = vmatprep.subr.mxu0 0.0
    %125 = vmatpush1.msra.mxu0 0.0
    %126 = vmatprep.subr.mxu0 0.0
    %127 = vmatpush1.msra.mxu0 0.0
    %128 = vmatprep.subr.mxu0 0.0
    %129 = vmatpush1.msra.mxu0 0.0
    %130 = vmatprep.subr.mxu0 0.0
    %131 = vmatpush1.msra.mxu0 0.0
    %132 = vmatprep.subr.mxu0 0.0
    %133 = vmatpush1.msra.mxu0 0.0
    %134 = vmatprep.subr.mxu0 0.0
    %135 = vmatpush1.msra.mxu0 0.0
    %136 = vmatprep.subr.mxu0 0.0
    %137 = vmatpush1.msra.mxu0 0.0
    %138 = vmatprep.subr.mxu0 0.0
    %139 = vmatpush1.msra.mxu0 0.0
    %140 = vmatprep.subr.mxu0 0.0
    %141 = vmatpush1.msra.mxu0 0.0
    %142 = vmatprep.subr.mxu0 0.0
    %143 = vmatpush1.msra.mxu0 0.0
    %144 = vmatprep.subr.mxu0 0.0
    %145 = vmatpush1.msra.mxu0 0.0
    %146 = vmatprep.subr.mxu0 0.0
    %147 = vmatpush1.msra.mxu0 0.0
    %148 = vmatprep.subr.mxu0 0.0
    %149 = vmatpush1.msra.mxu0 0.0
    %150 = vmatprep.subr.mxu0 0.0
    %151 = vmatpush1.msra.mxu0 0.0
    %152 = vmatprep.subr.mxu0 0.0
    %153 = vmatpush1.msra.mxu0 0.0
    %154 = vmatprep.mubr.f32.mxu0 0.0
    %155 = vmatmul.mubr.f32.gmra.mrb[0].mxu0 %v88
    %v156 = vpop.f32.mrb[0].mxu0
    %v157 = vadd.f32 %v84, %v156
    %v158 = vpop.f32.mrb[0].mxu0
    %159 = vdwg.mxu0
    %v160 = vld [vmem:[#allocation8] sm:$0xff]
    %v161 = vld [vmem:[#allocation8 + $0x8] sm:$0xff]
    %v162 = vld [vmem:[%s5] sm:$0x1]
    %v164 = vlaneseq
    %v165 = vshrl.u32 %v164, 7
    %v166 = vsub.s32 0, %v165
    %v167 = vrot.slane %v162, %v166
    %v170 = vsel %vm86, %v76, 0
    %172 = vmatprep.subr.mxu0 0.0
    %173 = vmatpush1.msra.mxu0 %v160
    %174 = vmatprep.subr.mxu0 0.0
    %175 = vmatpush1.msra.mxu0 %v161
    %176 = vmatprep.subr.mxu0 0.0
    %177 = vmatpush1.msra.mxu0 0.0
    %178 = vmatprep.subr.mxu0 0.0
    %179 = vmatpush1.msra.mxu0 0.0
    %180 = vmatprep.subr.mxu0 0.0
    %181 = vmatpush1.msra.mxu0 0.0
    %182 = vmatprep.subr.mxu0 0.0
    %183 = vmatpush1.msra.mxu0 0.0
    %184 = vmatprep.subr.mxu0 0.0
    %185 = vmatpush1.msra.mxu0 0.0
    %186 = vmatprep.subr.mxu0 0.0
    %187 = vmatpush1.msra.mxu0 0.0
    %188 = vmatprep.subr.mxu0 0.0
    %189 = vmatpush1.msra.mxu0 0.0
    %190 = vmatprep.subr.mxu0 0.0
    %191 = vmatpush1.msra.mxu0 0.0
    %192 = vmatprep.subr.mxu0 0.0
    %193 = vmatpush1.msra.mxu0 0.0
    %194 = vmatprep.subr.mxu0 0.0
    %195 = vmatpush1.msra.mxu0 0.0
    %196 = vmatprep.subr.mxu0 0.0
    %197 = vmatpush1.msra.mxu0 0.0
    %198 = vmatprep.subr.mxu0 0.0
    %199 = vmatpush1.msra.mxu0 0.0
    %200 = vmatprep.subr.mxu0 0.0
    %201 = vmatpush1.msra.mxu0 0.0
    %202 = vmatprep.subr.mxu0 0.0
    %203 = vmatpush1.msra.mxu0 0.0
    %204 = vmatprep.subr.mxu0 0.0
    %205 = vmatpush1.msra.mxu0 0.0
    %206 = vmatprep.subr.mxu0 0.0
    %207 = vmatpush1.msra.mxu0 0.0
    %208 = vmatprep.subr.mxu0 0.0
    %209 = vmatpush1.msra.mxu0 0.0
    %210 = vmatprep.subr.mxu0 0.0
    %211 = vmatpush1.msra.mxu0 0.0
    %212 = vmatprep.subr.mxu0 0.0
    %213 = vmatpush1.msra.mxu0 0.0
    %214 = vmatprep.subr.mxu0 0.0
    %215 = vmatpush1.msra.mxu0 0.0
    %216 = vmatprep.subr.mxu0 0.0
    %217 = vmatpush1.msra.mxu0 0.0
    %218 = vmatprep.subr.mxu0 0.0
    %219 = vmatpush1.msra.mxu0 0.0
    %220 = vmatprep.subr.mxu0 0.0
    %221 = vmatpush1.msra.mxu0 0.0
    %222 = vmatprep.subr.mxu0 0.0
    %223 = vmatpush1.msra.mxu0 0.0
    %224 = vmatprep.subr.mxu0 0.0
    %225 = vmatpush1.msra.mxu0 0.0
    %226 = vmatprep.subr.mxu0 0.0
    %227 = vmatpush1.msra.mxu0 0.0
    %228 = vmatprep.subr.mxu0 0.0
    %229 = vmatpush1.msra.mxu0 0.0
    %230 = vmatprep.subr.mxu0 0.0
    %231 = vmatpush1.msra.mxu0 0.0
    %232 = vmatprep.subr.mxu0 0.0
    %233 = vmatpush1.msra.mxu0 0.0
    %234 = vmatprep.subr.mxu0 0.0
    %235 = vmatpush1.msra.mxu0 0.0
    %236 = vmatprep.mubr.f32.mxu0 0.0
    %237 = vmatmul.mubr.f32.gmra.mrb[0].mxu0 %v170
    %v238 = vpop.f32.mrb[0].mxu0
    %v239 = vadd.f32 %v167, %v238
    %v240 = vpop.f32.mrb[0].mxu0
    %241 = vdwg.mxu0
    %v242 = vmul.f32 %v157, %v157
    %vm243 = vcmask 261120
    %v244 = vsel %vm243, %v242, 0.0
    %245 = vadd.xlane.f32.xlu0 %v244
    %v246 = vpop.xlane.xlu0 %245
    %v247 = vrot.slane %v246, 4
    %v248 = vadd.f32 %v246, %v247
    %v249 = vrot.slane %v248, 2
    %v250 = vadd.f32 %v248, %v249
    %v251 = vrot.slane %v250, 1
    %v252 = vadd.f32 %v250, %v251
    %s253 = vtos %v252
    %v254 = vstv %s253
    %v255 = vrsqrt.pop %v254
    %s256 = vtos %v255
    %v257 = vmul.f32 %v239, %v239
    %v258 = vsel %vm243, %v257, 0.0
    %259 = vadd.xlane.f32.xlu0 %v258
    %v260 = vpop.xlane.xlu0 %259
    %v261 = vrot.slane %v260, 4
    %v262 = vadd.f32 %v260, %v261
    %v263 = vrot.slane %v262, 2
    %v264 = vadd.f32 %v262, %v263
    %v265 = vrot.slane %v264, 1
    %v266 = vadd.f32 %v264, %v265
    %s267 = vtos %v266
    %v268 = vstv %s267
    %v269 = vrsqrt.pop %v268
    %s270 = vtos %v269
    %s271 = smul.f32 %s256, %s270
    %v272 = vstv %s271
    %v273 = vmul.f32 %v157, %v272
    %274 = vxpose.xlu0.b32.start [1/16] %v239, 128
    %275 = vxpose.xlu0.b32.cont [2/16] 0.0, 128
    %276 = vxpose.xlu0.b32.cont [3/16] 0.0, 128
    %277 = vxpose.xlu0.b32.cont [4/16] 0.0, 128
    %278 = vxpose.xlu0.b32.cont [5/16] 0.0, 128
    %279 = vxpose.xlu0.b32.cont [6/16] 0.0, 128
    %280 = vxpose.xlu0.b32.cont [7/16] 0.0, 128
    %281 = vxpose.xlu0.b32.cont [8/16] 0.0, 128
    %282 = vxpose.xlu0.b32.cont [9/16] 0.0, 128
    %283 = vxpose.xlu0.b32.cont [10/16] 0.0, 128
    %284 = vxpose.xlu0.b32.cont [11/16] 0.0, 128
    %285 = vxpose.xlu0.b32.cont [12/16] 0.0, 128
    %286 = vxpose.xlu0.b32.cont [13/16] 0.0, 128
    %287 = vxpose.xlu0.b32.cont [14/16] 0.0, 128
    %288 = vxpose.xlu0.b32.cont [15/16] 0.0, 128
    %289 = vxpose.xlu0.b32.end [16/16] 0.0, 128
    %v290 = vpop.trf.xlu0
    %v291 = vpop.trf.xlu0
    %v292 = vpop.trf.xlu0
    %v293 = vpop.trf.xlu0
    %v294 = vpop.trf.xlu0
    %v295 = vpop.trf.xlu0
    %v296 = vpop.trf.xlu0
    %v297 = vpop.trf.xlu0
    %v298 = vpop.trf.xlu0
    %v299 = vpop.trf.xlu0
    %v300 = vpop.trf.xlu0
    %v301 = vpop.trf.xlu0
    %v302 = vpop.trf.xlu0
    %v303 = vpop.trf.xlu0
    %v304 = vpop.trf.xlu0
    %v305 = vpop.trf.xlu0
    %307 = vrot.lane.b32.xlu0 %v239, 96
    %v308 = vpop.permute.xlu0 %307
    %vm310 = vcmask 64512
    %v312 = vsel %vm310, %v290, 0
    %v315 = vsel %vm310, %v291, 0
    %v318 = vsel %vm310, %v292, 0
    %v321 = vsel %vm310, %v293, 0
    %323 = vmatprep.subr.mxu0 0.0
    %324 = vmatpush1.msra.mxu0 %v308
    %325 = vmatprep.subr.mxu0 0.0
    %326 = vmatpush1.msra.mxu0 0.0
    %327 = vmatprep.subr.mxu0 0.0
    %328 = vmatpush1.msra.mxu0 0.0
    %329 = vmatprep.subr.mxu0 0.0
    %330 = vmatpush1.msra.mxu0 0.0
    %331 = vmatprep.subr.mxu0 0.0
    %332 = vmatpush1.msra.mxu0 0.0
    %333 = vmatprep.subr.mxu0 0.0
    %334 = vmatpush1.msra.mxu0 0.0
    %335 = vmatprep.subr.mxu0 0.0
    %336 = vmatpush1.msra.mxu0 0.0
    %337 = vmatprep.subr.mxu0 0.0
    %338 = vmatpush1.msra.mxu0 0.0
    %339 = vmatprep.subr.mxu0 0.0
    %340 = vmatpush1.msra.mxu0 0.0
    %341 = vmatprep.subr.mxu0 0.0
    %342 = vmatpush1.msra.mxu0 0.0
    %343 = vmatprep.subr.mxu0 0.0
    %344 = vmatpush1.msra.mxu0 0.0
    %345 = vmatprep.subr.mxu0 0.0
    %346 = vmatpush1.msra.mxu0 0.0
    %347 = vmatprep.subr.mxu0 0.0
    %348 = vmatpush1.msra.mxu0 0.0
    %349 = vmatprep.subr.mxu0 0.0
    %350 = vmatpush1.msra.mxu0 0.0
    %351 = vmatprep.subr.mxu0 0.0
    %352 = vmatpush1.msra.mxu0 0.0
    %353 = vmatprep.subr.mxu0 0.0
    %354 = vmatpush1.msra.mxu0 0.0
    %355 = vmatprep.subr.mxu0 0.0
    %356 = vmatpush1.msra.mxu0 0.0
    %357 = vmatprep.subr.mxu0 0.0
    %358 = vmatpush1.msra.mxu0 0.0
    %359 = vmatprep.subr.mxu0 0.0
    %360 = vmatpush1.msra.mxu0 0.0
    %361 = vmatprep.subr.mxu0 0.0
    %362 = vmatpush1.msra.mxu0 0.0
    %363 = vmatprep.subr.mxu0 0.0
    %364 = vmatpush1.msra.mxu0 0.0
    %365 = vmatprep.subr.mxu0 0.0
    %366 = vmatpush1.msra.mxu0 0.0
    %367 = vmatprep.subr.mxu0 0.0
    %368 = vmatpush1.msra.mxu0 0.0
    %369 = vmatprep.subr.mxu0 0.0
    %370 = vmatpush1.msra.mxu0 0.0
    %371 = vmatprep.subr.mxu0 0.0
    %372 = vmatpush1.msra.mxu0 0.0
    %373 = vmatprep.subr.mxu0 0.0
    %374 = vmatpush1.msra.mxu0 0.0
    %375 = vmatprep.subr.mxu0 0.0
    %376 = vmatpush1.msra.mxu0 0.0
    %377 = vmatprep.subr.mxu0 0.0
    %378 = vmatpush1.msra.mxu0 0.0
    %379 = vmatprep.subr.mxu0 0.0
    %380 = vmatpush1.msra.mxu0 0.0
    %381 = vmatprep.subr.mxu0 0.0
    %382 = vmatpush1.msra.mxu0 0.0
    %383 = vmatprep.subr.mxu0 0.0
    %384 = vmatpush1.msra.mxu0 0.0
    %385 = vmatprep.subr.mxu0 0.0
    %386 = vmatpush1.msra.mxu0 0.0
    %387 = vmatprep.mubr.f32.mxu0 0.0
    %388 = vmatmul.mubr.f32.gmra.mrb[0].mxu0 %v312
    %v389 = vpop.f32.mrb[0].mxu0
    %v390 = vadd.f32 0.0, %v389
    %v391 = vpop.f32.mrb[0].mxu0
    %392 = vmatprep.mubr.f32.mxu0 0.0
    %393 = vmatmul.mubr.f32.gmra.mrb[0].mxu0 %v315
    %v394 = vpop.f32.mrb[0].mxu0
    %v395 = vadd.f32 0.0, %v394
    %v396 = vpop.f32.mrb[0].mxu0
    %397 = vmatprep.mubr.f32.mxu0 0.0
    %398 = vmatmul.mubr.f32.gmra.mrb[0].mxu0 %v318
    %v399 = vpop.f32.mrb[0].mxu0
    %v400 = vadd.f32 0.0, %v399
    %v401 = vpop.f32.mrb[0].mxu0
    %402 = vmatprep.mubr.f32.mxu0 0.0
    %403 = vmatmul.mubr.f32.gmra.mrb[0].mxu0 %v321
    %v404 = vpop.f32.mrb[0].mxu0
    %v405 = vadd.f32 0.0, %v404
    %v406 = vpop.f32.mrb[0].mxu0
    %407 = vdwg.mxu0
    %v408 = vmul.f32 %v239, 8.0
    %410 = vrot.lane.b32.xlu0 %v408, 96
    %v411 = vpop.permute.xlu0 %410
    %v414 = vsel %vm243, %v273, 0
    %416 = vmatprep.subr.mxu0 0.0
    %417 = vmatpush1.msra.mxu0 %v390
    %418 = vmatprep.subr.mxu0 0.0
    %419 = vmatpush1.msra.mxu0 %v395
    %420 = vmatprep.subr.mxu0 0.0
    %421 = vmatpush1.msra.mxu0 %v400
    %422 = vmatprep.subr.mxu0 0.0
    %423 = vmatpush1.msra.mxu0 %v405
    %424 = vmatprep.subr.mxu0 0.0
    %425 = vmatpush1.msra.mxu0 0.0
    %426 = vmatprep.subr.mxu0 0.0
    %427 = vmatpush1.msra.mxu0 0.0
    %428 = vmatprep.subr.mxu0 0.0
    %429 = vmatpush1.msra.mxu0 0.0
    %430 = vmatprep.subr.mxu0 0.0
    %431 = vmatpush1.msra.mxu0 0.0
    %432 = vmatprep.subr.mxu0 0.0
    %433 = vmatpush1.msra.mxu0 0.0
    %434 = vmatprep.subr.mxu0 0.0
    %435 = vmatpush1.msra.mxu0 0.0
    %436 = vmatprep.subr.mxu0 0.0
    %437 = vmatpush1.msra.mxu0 0.0
    %438 = vmatprep.subr.mxu0 0.0
    %439 = vmatpush1.msra.mxu0 0.0
    %440 = vmatprep.subr.mxu0 0.0
    %441 = vmatpush1.msra.mxu0 0.0
    %442 = vmatprep.subr.mxu0 0.0
    %443 = vmatpush1.msra.mxu0 0.0
    %444 = vmatprep.subr.mxu0 0.0
    %445 = vmatpush1.msra.mxu0 0.0
    %446 = vmatprep.subr.mxu0 0.0
    %447 = vmatpush1.msra.mxu0 0.0
    %448 = vmatprep.subr.mxu0 0.0
    %449 = vmatpush1.msra.mxu0 0.0
    %450 = vmatprep.subr.mxu0 0.0
    %451 = vmatpush1.msra.mxu0 0.0
    %452 = vmatprep.subr.mxu0 0.0
    %453 = vmatpush1.msra.mxu0 0.0
    %454 = vmatprep.subr.mxu0 0.0
    %455 = vmatpush1.msra.mxu0 0.0
    %456 = vmatprep.subr.mxu0 0.0
    %457 = vmatpush1.msra.mxu0 0.0
    %458 = vmatprep.subr.mxu0 0.0
    %459 = vmatpush1.msra.mxu0 0.0
    %460 = vmatprep.subr.mxu0 0.0
    %461 = vmatpush1.msra.mxu0 0.0
    %462 = vmatprep.subr.mxu0 0.0
    %463 = vmatpush1.msra.mxu0 0.0
    %464 = vmatprep.subr.mxu0 0.0
    %465 = vmatpush1.msra.mxu0 0.0
    %466 = vmatprep.subr.mxu0 0.0
    %467 = vmatpush1.msra.mxu0 0.0
    %468 = vmatprep.subr.mxu0 0.0
    %469 = vmatpush1.msra.mxu0 0.0
    %470 = vmatprep.subr.mxu0 0.0
    %471 = vmatpush1.msra.mxu0 0.0
    %472 = vmatprep.subr.mxu0 0.0
    %473 = vmatpush1.msra.mxu0 0.0
    %474 = vmatprep.subr.mxu0 0.0
    %475 = vmatpush1.msra.mxu0 0.0
    %476 = vmatprep.subr.mxu0 0.0
    %477 = vmatpush1.msra.mxu0 0.0
    %478 = vmatprep.subr.mxu0 0.0
    %479 = vmatpush1.msra.mxu0 0.0
    %480 = vmatprep.mubr.f32.mxu0 0.0
    %481 = vmatmul.mubr.f32.gmra.mrb[0].mxu0 %v414
    %v482 = vpop.f32.mrb[0].mxu0
    %v483 = vadd.f32 %v411, %v482
    %v484 = vpop.f32.mrb[0].mxu0
    %485 = vdwg.mxu0
    %v486 = vsel %vm243, %v239, 0.0
    %v487 = vrot.slane %v486, 4
    %v488 = vadd.f32 %v486, %v487
    %v489 = vrot.slane %v488, 2
    %v490 = vadd.f32 %v488, %v489
    %v491 = vrot.slane %v490, 1
    %v492 = vadd.f32 %v490, %v491
    %v493 = vmul.f32 %v273, %v492
    %v494 = vsel %vm243, %v493, 0.0
    %495 = vadd.xlane.f32.xlu0 %v494
    %v496 = vpop.xlane.xlu0 %495
    %v497 = vadd.f32 %v496, 8.0
    %v498 = vrcp.pop %v497
    %v499 = vmul.f32 %v483, %v498
    %500 = vst.msk [vmem:[#allocation10] sm:$0xff] %vm243, %v499
    // Predicated region
    $region42: #{tpu_custom_call.1} parent=1 // pred_check
      _
    $region43: #{tpu_custom_call.1} parent=1 // pred_check_branch
      %502 = sbr.rel (0) target = $region45
    $region44: #{tpu_custom_call.1} parent=1 // pred_region
      %s504 = ssub.s32 128, 128
      %505 = vsyncadd [#allocation4], %s504
      %s507 = sshll.u32 [#allocation10], 4
      %s508 = int_to_ptr.vmem [resolvable:$true] %s507
      %510 = dma.vmem_to_hbm [thread:$0]  %s508, 128, %s6, [#allocation4]
    $region45: #{tpu_custom_call.1} parent=1 // pred_fallthru
      _
    // Predicated region
    $region46: #{tpu_custom_call.1} parent=1 // pred_check
      _
    $region47: #{tpu_custom_call.1} parent=1 // pred_check_branch
      %512 = sbr.rel (0) target = $region49
    $region48: #{tpu_custom_call.1} parent=1 // pred_region
      %513 = dma.done [#allocation4], 128
    $region49: #{tpu_custom_call.1} parent=1 // pred_fallthru
      _
    %514 = vsyncpa [#allocation3], 1
    %515 = vsyncpa [#allocation6], 1
    %516 = vsyncpa [#allocation9], 1
    %517 = vsyncpa [#allocation4], 1

</llo_original>
